<compile_context>
chip_gen: v7x
topology: tpu7x:2x2x1
jax: 0.10.0
libtpu: 0.0.40
codegen_flags: <defaults>
</compile_context>

<pallas_src>
import functools

import jax
import jax.numpy as jnp
from jax.experimental import pallas as pl
from jax.experimental.pallas import tpu as pltpu


def _round_up(x, m):
    return ((x + m - 1) // m) * m


def actor_forward_kernel(x_ref, w1_ref, w2_ref, w3_ref, bias_ref, out_ref, *,
                         fc1_dims, fc2_dims, n_actions):
    """One batch tile: fc1+relu -> fc2+relu -> mu+tanh, all f32 on the MXU/VPU/EUP."""
    x = x_ref[...]                                            # (bt, D_in)

    # fc1 + relu   (weights are (in, out): plain x @ W, MXU-native orientation)
    h1 = jnp.dot(x, w1_ref[...], preferred_element_type=jnp.float32)
    h1 = jnp.maximum(h1 + bias_ref[0:1, :fc1_dims], 0.0)

    # fc2 + relu
    h2 = jnp.dot(h1, w2_ref[...], preferred_element_type=jnp.float32)
    h2 = jnp.maximum(h2 + bias_ref[1:2, :fc2_dims], 0.0)

    # mu + tanh: narrow n_actions-wide result, masked store -> no lane padding,
    # no wasted tanh lanes, 32x less output DMA than a 128-lane-padded store.
    mu = jnp.dot(h2, w3_ref[...], preferred_element_type=jnp.float32)
    mu = mu + bias_ref[2:3, :n_actions]
    out_ref[...] = jnp.tanh(mu).astype(out_ref.dtype)


def prepare_actor_params(w1, b1, w2, b2, w3, b3):
    """One-time parameter prep (call OUTSIDE the per-step hot path).

    * Transposes PyTorch (out, in) weights to MXU-native (in, out) once.
    * Packs the three biases into a single (3, width) operand -> one DMA.
    """
    fc1_dims, input_dim = w1.shape
    fc2_dims = w2.shape[0]
    n_actions = w3.shape[0]

    bias_width = max(fc1_dims, fc2_dims, n_actions)
    bias = jnp.zeros((3, bias_width), jnp.float32)
    bias = bias.at[0, :fc1_dims].set(b1.astype(jnp.float32))
    bias = bias.at[1, :fc2_dims].set(b2.astype(jnp.float32))
    bias = bias.at[2, :n_actions].set(b3.astype(jnp.float32))

    return {
        "w1t": jnp.asarray(w1, jnp.float32).T,   # (input_dim, fc1_dims)
        "w2t": jnp.asarray(w2, jnp.float32).T,   # (fc1_dims, fc2_dims)
        "w3t": jnp.asarray(w3, jnp.float32).T,   # (fc2_dims, n_actions)
        "bias": bias,
        "input_dim": input_dim,
        "fc1_dims": fc1_dims,
        "fc2_dims": fc2_dims,
        "n_actions": n_actions,
    }


def _choose_batch_tile(batch, batch_tile):
    if batch <= batch_tile:
        if batch >= 16:
            # >= 2 grid steps so the "parallel" batch axis can be sharded
            # across both TensorCores on v7x; near-free on single-TC chips.
            return _round_up(pl.cdiv(batch, 2), 8)
        # Tiny batch: single block whose shape equals the full array dims
        # (legal for any B under the (8,128) rule).
        return batch
    return batch_tile


def actor_forward(state, params, *, batch_tile=4096,
                  vmem_limit_bytes=40 * 1024 * 1024):
    """state: (B, input_dim) float32; params: output of prepare_actor_params.

    batch_tile=4096 keeps the per-step footprint (~3.5 KB/row after lane
    padding, double-buffered I/O + temporaries) around 14 MiB, which fits the
    explicit 40 MiB VMEM limit on every generation (v7x physical is 64 MiB).
    """
    B, input_dim = state.shape
    assert input_dim == params["input_dim"]
    fc1_dims = params["fc1_dims"]
    fc2_dims = params["fc2_dims"]
    n_actions = params["n_actions"]

    bt = _choose_batch_tile(B, batch_tile)
    grid = (pl.cdiv(B, bt),)   # ragged last block is masked by Pallas

    kernel = functools.partial(actor_forward_kernel,
                               fc1_dims=fc1_dims, fc2_dims=fc2_dims,
                               n_actions=n_actions)

    return pl.pallas_call(
        kernel,
        out_shape=jax.ShapeDtypeStruct((B, n_actions), jnp.float32),
        grid=grid,
        in_specs=[
            pl.BlockSpec((bt, input_dim), lambda i: (i, 0)),
            # Weights/bias: full arrays with constant index maps -> stay
            # VMEM-resident across batch tiles (one DMA each for the call).
            pl.BlockSpec(params["w1t"].shape, lambda i: (0, 0)),
            pl.BlockSpec(params["w2t"].shape, lambda i: (0, 0)),
            pl.BlockSpec(params["w3t"].shape, lambda i: (0, 0)),
            pl.BlockSpec(params["bias"].shape, lambda i: (0, 0)),
        ],
        out_specs=pl.BlockSpec((bt, n_actions), lambda i: (i, 0)),
        compiler_params=pltpu.CompilerParams(
            dimension_semantics=("parallel",),
            vmem_limit_bytes=vmem_limit_bytes),
    )(state, params["w1t"], params["w2t"], params["w3t"], params["bias"])


def init_linear(key, in_features, out_features):
    """Deterministic init mimicking nn.Linear default (U[-1/sqrt(in), 1/sqrt(in)])."""
    kw, kb = jax.random.split(key)
    bound = 1.0 / jnp.sqrt(jnp.float32(in_features))
    w = jax.random.uniform(kw, (out_features, in_features), jnp.float32,
                           minval=-bound, maxval=bound)
    b = jax.random.uniform(kb, (out_features,), jnp.float32,
                           minval=-bound, maxval=bound)
    return w, b


def _reference(state, w1, b1, w2, b2, w3, b3):
    ref = jnp.maximum(state @ w1.T + b1, 0.0)
    ref = jnp.maximum(ref @ w2.T + b2, 0.0)
    return jnp.tanh(ref @ w3.T + b3)


if __name__ == "__main__":
    # Shapes consistent with the module: input_dims=(8,), fc1=32, fc2=32,
    # n_actions=4, batch=2.
    batch, input_dim, fc1_dims, fc2_dims, n_actions = 2, 8, 32, 32, 4

    key = jax.random.PRNGKey(0)
    k_state, k1, k2, k3, k_big = jax.random.split(key, 5)

    state = jax.random.normal(k_state, (batch, input_dim), jnp.float32)
    w1, b1 = init_linear(k1, input_dim, fc1_dims)
    w2, b2 = init_linear(k2, fc1_dims, fc2_dims)
    w3, b3 = init_linear(k3, fc2_dims, n_actions)

    # One-time parameter preparation (outside the per-call hot path).
    params = prepare_actor_params(w1, b1, w2, b2, w3, b3)

    # Small-batch call (single grid step, block == full array dims).
    out = jax.block_until_ready(actor_forward(state, params))
    ref = _reference(state, w1, b1, w2, b2, w3, b3)
    assert out.shape == (batch, n_actions)
    assert jnp.allclose(out, ref, atol=1e-5), "mismatch vs reference (small batch)"

    # Non-divisible larger batch: >=2-step parallel grid (v7x megacore) with a
    # ragged, masked last block and no wrapper-side pad/slice copies.
    big_b = 1029
    big_state = jax.random.normal(k_big, (big_b, input_dim), jnp.float32)
    big_out = jax.block_until_ready(actor_forward(big_state, params))
    big_ref = _reference(big_state, w1, b1, w2, b2, w3, b3)
    assert big_out.shape == (big_b, n_actions)
    assert jnp.allclose(big_out, big_ref, atol=1e-5), "mismatch vs reference (big batch)"

    # Force the multi-tile path (B > batch_tile) to exercise VMEM-resident
    # weights across several grid steps plus a ragged final block.
    tiled_out = jax.block_until_ready(
        actor_forward(big_state, params, batch_tile=256))
    assert jnp.allclose(tiled_out, big_ref, atol=1e-5), "mismatch vs reference (tiled)"

    print("KERNEL_OK")
</pallas_src>

<mosaic_0001>
module attributes {stable_mosaic.version = 11 : i64} {
  func.func @actor_forward_kernel(%arg0: i32, %arg1: memref<2x8xf32, #tpu.memory_space<vmem>>, %arg2: memref<8x32xf32, #tpu.memory_space<vmem>>, %arg3: memref<32x32xf32, #tpu.memory_space<vmem>>, %arg4: memref<32x4xf32, #tpu.memory_space<vmem>>, %arg5: memref<3x32xf32, #tpu.memory_space<vmem>>, %arg6: memref<2x4xf32, #tpu.memory_space<vmem>>) attributes {dimension_semantics = [#tpu.dimension_semantics<parallel>], iteration_bounds = array<i64: 1>, scalar_prefetch = 0 : i64, scratch_operands = 0 : i64, tpu.core_type = #tpu.core_type<tc>, window_params = [{transform_indices = @transform_0, window_bounds = array<i64: 2, 8>}, {pipeline_mode = #tpu.pipeline_mode<synchronous>, transform_indices = @transform_1, window_bounds = array<i64: 8, 32>}, {pipeline_mode = #tpu.pipeline_mode<synchronous>, transform_indices = @transform_2, window_bounds = array<i64: 32, 32>}, {pipeline_mode = #tpu.pipeline_mode<synchronous>, transform_indices = @transform_3, window_bounds = array<i64: 32, 4>}, {pipeline_mode = #tpu.pipeline_mode<synchronous>, transform_indices = @transform_4, window_bounds = array<i64: 3, 32>}, {transform_indices = @transform_5, window_bounds = array<i64: 2, 4>}]} {
    %c0 = arith.constant 0 : index
    %c0_0 = arith.constant 0 : index
    %0 = vector.load %arg1[%c0, %c0_0] : memref<2x8xf32, #tpu.memory_space<vmem>>, vector<2x8xf32>
    %c0_1 = arith.constant 0 : index
    %c0_2 = arith.constant 0 : index
    %1 = vector.load %arg2[%c0_1, %c0_2] : memref<8x32xf32, #tpu.memory_space<vmem>>, vector<8x32xf32>
    %cst = arith.constant dense<0.000000e+00> : vector<2x32xf32>
    %2 = tpu.matmul %0, %1, %cst {dimension_numbers = #tpu.dot_dimension_numbers<[1], [0], [0], [1], [0, 0, 1, 1], [], []>} : vector<2x8xf32>, vector<8x32xf32>, vector<2x32xf32> -> vector<2x32xf32>
    %c0_3 = arith.constant 0 : index
    %c0_4 = arith.constant 0 : index
    %3 = vector.load %arg5[%c0_3, %c0_4] : memref<3x32xf32, #tpu.memory_space<vmem>>, vector<1x32xf32>
    %4 = vector.broadcast %3 : vector<1x32xf32> to vector<2x32xf32>
    %5 = arith.addf %2, %4 : vector<2x32xf32>
    %cst_5 = arith.constant 0.000000e+00 : f32
    %6 = vector.broadcast %cst_5 : f32 to vector<2x32xf32>
    %7 = arith.maximumf %5, %6 : vector<2x32xf32>
    %c0_6 = arith.constant 0 : index
    %c0_7 = arith.constant 0 : index
    %8 = vector.load %arg3[%c0_6, %c0_7] : memref<32x32xf32, #tpu.memory_space<vmem>>, vector<32x32xf32>
    %cst_8 = arith.constant dense<0.000000e+00> : vector<2x32xf32>
    %9 = tpu.matmul %7, %8, %cst_8 {dimension_numbers = #tpu.dot_dimension_numbers<[1], [0], [0], [1], [0, 0, 1, 1], [], []>} : vector<2x32xf32>, vector<32x32xf32>, vector<2x32xf32> -> vector<2x32xf32>
    %c1 = arith.constant 1 : index
    %c0_9 = arith.constant 0 : index
    %10 = vector.load %arg5[%c1, %c0_9] : memref<3x32xf32, #tpu.memory_space<vmem>>, vector<1x32xf32>
    %11 = vector.broadcast %10 : vector<1x32xf32> to vector<2x32xf32>
    %12 = arith.addf %9, %11 : vector<2x32xf32>
    %cst_10 = arith.constant 0.000000e+00 : f32
    %13 = vector.broadcast %cst_10 : f32 to vector<2x32xf32>
    %14 = arith.maximumf %12, %13 : vector<2x32xf32>
    %c0_11 = arith.constant 0 : index
    %c0_12 = arith.constant 0 : index
    %15 = vector.load %arg4[%c0_11, %c0_12] : memref<32x4xf32, #tpu.memory_space<vmem>>, vector<32x4xf32>
    %cst_13 = arith.constant dense<0.000000e+00> : vector<2x4xf32>
    %16 = tpu.matmul %14, %15, %cst_13 {dimension_numbers = #tpu.dot_dimension_numbers<[1], [0], [0], [1], [0, 0, 1, 1], [], []>} : vector<2x32xf32>, vector<32x4xf32>, vector<2x4xf32> -> vector<2x4xf32>
    %c2 = arith.constant 2 : index
    %c0_14 = arith.constant 0 : index
    %17 = vector.load %arg5[%c2, %c0_14] : memref<3x32xf32, #tpu.memory_space<vmem>>, vector<1x4xf32>
    %18 = vector.broadcast %17 : vector<1x4xf32> to vector<2x4xf32>
    %19 = arith.addf %16, %18 : vector<2x4xf32>
    %20 = math.tanh %19 : vector<2x4xf32>
    %c0_15 = arith.constant 0 : index
    %c0_16 = arith.constant 0 : index
    %21 = vector.load %arg6[%c0_15, %c0_16] : memref<2x4xf32, #tpu.memory_space<vmem>>, vector<2x4xf32>
    tpu.vector_store %arg6[%c0_15, %c0_16], %20 {strides = array<i32>} : memref<2x4xf32, #tpu.memory_space<vmem>>, vector<2x4xf32>,
    return
  }
  func.func @transform_0(%arg0: i32) -> (i32, i32) {
    %c0_i32 = arith.constant 0 : i32
    %c0_i32_0 = arith.constant 0 : i32
    return %arg0, %c0_i32 : i32, i32
  }
  func.func @transform_1(%arg0: i32) -> (i32, i32) {
    %c0_i32 = arith.constant 0 : i32
    %c0_i32_0 = arith.constant 0 : i32
    %c0_i32_1 = arith.constant 0 : i32
    return %c0_i32, %c0_i32_0 : i32, i32
  }
  func.func @transform_2(%arg0: i32) -> (i32, i32) {
    %c0_i32 = arith.constant 0 : i32
    %c0_i32_0 = arith.constant 0 : i32
    %c0_i32_1 = arith.constant 0 : i32
    return %c0_i32, %c0_i32_0 : i32, i32
  }
  func.func @transform_3(%arg0: i32) -> (i32, i32) {
    %c0_i32 = arith.constant 0 : i32
    %c0_i32_0 = arith.constant 0 : i32
    %c0_i32_1 = arith.constant 0 : i32
    return %c0_i32, %c0_i32_0 : i32, i32
  }
  func.func @transform_4(%arg0: i32) -> (i32, i32) {
    %c0_i32 = arith.constant 0 : i32
    %c0_i32_0 = arith.constant 0 : i32
    %c0_i32_1 = arith.constant 0 : i32
    return %c0_i32, %c0_i32_0 : i32, i32
  }
  func.func @transform_5(%arg0: i32) -> (i32, i32) {
    %c0_i32 = arith.constant 0 : i32
    %c0_i32_0 = arith.constant 0 : i32
    return %arg0, %c0_i32 : i32, i32
  }
}

</mosaic_0001>

<llo_original>
// kernel: tpu_custom_call.1
$region0: #{tpu_custom_call.1}
  #allocation0 [shape = 'u32[]', space=smem, size = 0x4, offset = 0x4, fixed_abs, tag = 'smem constant byte address 0x4 - core index']
  #allocation1 [shape = 'u32[144,128]{1,0:T(1,128)}', space=vmem, size = 0x12000, scoped, tag = 'internal scratch']
  %s0 = inlined_call_operand.vmem [shape: f32[2,8], index: 0, kind: input, shape index: {}]
  %s1 = inlined_call_operand.vmem [shape: f32[8,32], index: 1, kind: input, shape index: {}]
  %s2 = inlined_call_operand.vmem [shape: f32[32,32], index: 2, kind: input, shape index: {}]
  %s3 = inlined_call_operand.vmem [shape: f32[32,4], index: 3, kind: input, shape index: {}]
  %s4 = inlined_call_operand.vmem [shape: f32[3,32], index: 4, kind: input, shape index: {}]
  %s5 = inlined_call_operand.hbm [shape: f32[2,4], index: 5, kind: output, shape index: {}]
  %s6 = sld [smem:[#allocation0]]
  $region30: #{tpu_custom_call.1} parent=0
    _
  %s8 = ssub.s32 1, %s6
  %s9 = scalar_select 0, %s8, %s6
  $region1: #{tpu_custom_call.1} parent=0
    #allocation2 [shape = 'u8[1024]{0}', space=vmem, size = 0x400, scoped, tag = 'output window, operand 0, single buffered']
    #allocation3 [shape = 's32[1]{0}', space=sflag, size = 0x4, scoped, tag = 'scoped memory for tpu_custom_call.1']
    %10 = vsyncpa [#allocation3], 0
    // Predicated region
    $region2: #{tpu_custom_call.1} parent=1 // pred_check
      _
    $region3: #{tpu_custom_call.1} parent=1 // pred_check_branch
      %12 = sbr.rel (0) target = $region5
    $region4: #{tpu_custom_call.1} parent=1 // pred_region
      _
    $region5: #{tpu_custom_call.1} parent=1 // pred_fallthru
      _
    // Predicated region
    $region6: #{tpu_custom_call.1} parent=1 // pred_check
      _
    $region7: #{tpu_custom_call.1} parent=1 // pred_check_branch
      %14 = sbr.rel (0) target = $region9
    $region8: #{tpu_custom_call.1} parent=1 // pred_region
      _
    $region9: #{tpu_custom_call.1} parent=1 // pred_fallthru
      _
    // Predicated region
    $region10: #{tpu_custom_call.1} parent=1 // pred_check
      _
    $region11: #{tpu_custom_call.1} parent=1 // pred_check_branch
      %16 = sbr.rel (0) target = $region13
    $region12: #{tpu_custom_call.1} parent=1 // pred_region
      _
    $region13: #{tpu_custom_call.1} parent=1 // pred_fallthru
      _
    // Predicated region
    $region14: #{tpu_custom_call.1} parent=1 // pred_check
      _
    $region15: #{tpu_custom_call.1} parent=1 // pred_check_branch
      %18 = sbr.rel (0) target = $region17
    $region16: #{tpu_custom_call.1} parent=1 // pred_region
      _
    $region17: #{tpu_custom_call.1} parent=1 // pred_fallthru
      _
    // Predicated region
    $region18: #{tpu_custom_call.1} parent=1 // pred_check
      _
    $region19: #{tpu_custom_call.1} parent=1 // pred_check_branch
      %20 = sbr.rel (0) target = $region21
    $region20: #{tpu_custom_call.1} parent=1 // pred_region
      _
    $region21: #{tpu_custom_call.1} parent=1 // pred_fallthru
      _
    %v21 = vld [vmem:[%s0] sm:$0x3]
    %v22 = vld [vmem:[%s1] sm:$0xff]
    %v23 = vld [vmem:[%s4] sm:$0x1]
    %v24 = vlaneseq
    %v25 = vshrl.u32 %v24, 7
    %v26 = vsub.s32 0, %v25
    %v27 = vrot.slane %v23, %v26
    %vm28 = vcmask 64512
    %v30 = vsel %vm28, %v21, 0
    %32 = vmatprep.subr.mxu0 0.0
    %33 = vmatpush1.msra.mxu0 %v22
    %34 = vmatprep.subr.mxu0 0.0
    %35 = vmatpush1.msra.mxu0 0.0
    %36 = vmatprep.subr.mxu0 0.0
    %37 = vmatpush1.msra.mxu0 0.0
    %38 = vmatprep.subr.mxu0 0.0
    %39 = vmatpush1.msra.mxu0 0.0
    %40 = vmatprep.subr.mxu0 0.0
    %41 = vmatpush1.msra.mxu0 0.0
    %42 = vmatprep.subr.mxu0 0.0
    %43 = vmatpush1.msra.mxu0 0.0
    %44 = vmatprep.subr.mxu0 0.0
    %45 = vmatpush1.msra.mxu0 0.0
    %46 = vmatprep.subr.mxu0 0.0
    %47 = vmatpush1.msra.mxu0 0.0
    %48 = vmatprep.subr.mxu0 0.0
    %49 = vmatpush1.msra.mxu0 0.0
    %50 = vmatprep.subr.mxu0 0.0
    %51 = vmatpush1.msra.mxu0 0.0
    %52 = vmatprep.subr.mxu0 0.0
    %53 = vmatpush1.msra.mxu0 0.0
    %54 = vmatprep.subr.mxu0 0.0
    %55 = vmatpush1.msra.mxu0 0.0
    %56 = vmatprep.subr.mxu0 0.0
    %57 = vmatpush1.msra.mxu0 0.0
    %58 = vmatprep.subr.mxu0 0.0
    %59 = vmatpush1.msra.mxu0 0.0
    %60 = vmatprep.subr.mxu0 0.0
    %61 = vmatpush1.msra.mxu0 0.0
    %62 = vmatprep.subr.mxu0 0.0
    %63 = vmatpush1.msra.mxu0 0.0
    %64 = vmatprep.subr.mxu0 0.0
    %65 = vmatpush1.msra.mxu0 0.0
    %66 = vmatprep.subr.mxu0 0.0
    %67 = vmatpush1.msra.mxu0 0.0
    %68 = vmatprep.subr.mxu0 0.0
    %69 = vmatpush1.msra.mxu0 0.0
    %70 = vmatprep.subr.mxu0 0.0
    %71 = vmatpush1.msra.mxu0 0.0
    %72 = vmatprep.subr.mxu0 0.0
    %73 = vmatpush1.msra.mxu0 0.0
    %74 = vmatprep.subr.mxu0 0.0
    %75 = vmatpush1.msra.mxu0 0.0
    %76 = vmatprep.subr.mxu0 0.0
    %77 = vmatpush1.msra.mxu0 0.0
    %78 = vmatprep.subr.mxu0 0.0
    %79 = vmatpush1.msra.mxu0 0.0
    %80 = vmatprep.subr.mxu0 0.0
    %81 = vmatpush1.msra.mxu0 0.0
    %82 = vmatprep.subr.mxu0 0.0
    %83 = vmatpush1.msra.mxu0 0.0
    %84 = vmatprep.subr.mxu0 0.0
    %85 = vmatpush1.msra.mxu0 0.0
    %86 = vmatprep.subr.mxu0 0.0
    %87 = vmatpush1.msra.mxu0 0.0
    %88 = vmatprep.subr.mxu0 0.0
    %89 = vmatpush1.msra.mxu0 0.0
    %90 = vmatprep.subr.mxu0 0.0
    %91 = vmatpush1.msra.mxu0 0.0
    %92 = vmatprep.subr.mxu0 0.0
    %93 = vmatpush1.msra.mxu0 0.0
    %94 = vmatprep.subr.mxu0 0.0
    %95 = vmatpush1.msra.mxu0 0.0
    %96 = vmatprep.mubr.f32.mxu0 0.0
    %97 = vmatmul.mubr.f32.gmra.mrb[0].mxu0 %v30
    %v98 = vpop.f32.mrb[0].mxu0
    %v99 = vadd.f32 %v27, %v98
    %v100 = vpop.f32.mrb[0].mxu0
    %101 = vdwg.mxu0
    %v102 = vmax.f32 %v99, 0.0
    %v103 = vld [vmem:[%s2] sm:$0xff]
    %v104 = vld [vmem:[%s2 + $0x8] sm:$0xff]
    %v105 = vld [vmem:[%s2 + $0x10] sm:$0xff]
    %v106 = vld [vmem:[%s2 + $0x18] sm:$0xff]
    %v107 = vld [vmem:[%s4 + $0x1] sm:$0x1]
    %v108 = vlaneseq
    %v109 = vshrl.u32 %v108, 7
    %v110 = vsub.s32 0, %v109
    %v111 = vrot.slane %v107, %v110
    %vm112 = vcmask 261120
    %v114 = vsel %vm112, %v102, 0
    %116 = vmatprep.subr.mxu0 0.0
    %117 = vmatpush1.msra.mxu0 %v103
    %118 = vmatprep.subr.mxu0 0.0
    %119 = vmatpush1.msra.mxu0 %v104
    %120 = vmatprep.subr.mxu0 0.0
    %121 = vmatpush1.msra.mxu0 %v105
    %122 = vmatprep.subr.mxu0 0.0
    %123 = vmatpush1.msra.mxu0 %v106
    %124 = vmatprep.subr.mxu0 0.0
    %125 = vmatpush1.msra.mxu0 0.0
    %126 = vmatprep.subr.mxu0 0.0
    %127 = vmatpush1.msra.mxu0 0.0
    %128 = vmatprep.subr.mxu0 0.0
    %129 = vmatpush1.msra.mxu0 0.0
    %130 = vmatprep.subr.mxu0 0.0
    %131 = vmatpush1.msra.mxu0 0.0
    %132 = vmatprep.subr.mxu0 0.0
    %133 = vmatpush1.msra.mxu0 0.0
    %134 = vmatprep.subr.mxu0 0.0
    %135 = vmatpush1.msra.mxu0 0.0
    %136 = vmatprep.subr.mxu0 0.0
    %137 = vmatpush1.msra.mxu0 0.0
    %138 = vmatprep.subr.mxu0 0.0
    %139 = vmatpush1.msra.mxu0 0.0
    %140 = vmatprep.subr.mxu0 0.0
    %141 = vmatpush1.msra.mxu0 0.0
    %142 = vmatprep.subr.mxu0 0.0
    %143 = vmatpush1.msra.mxu0 0.0
    %144 = vmatprep.subr.mxu0 0.0
    %145 = vmatpush1.msra.mxu0 0.0
    %146 = vmatprep.subr.mxu0 0.0
    %147 = vmatpush1.msra.mxu0 0.0
    %148 = vmatprep.subr.mxu0 0.0
    %149 = vmatpush1.msra.mxu0 0.0
    %150 = vmatprep.subr.mxu0 0.0
    %151 = vmatpush1.msra.mxu0 0.0
    %152 = vmatprep.subr.mxu0 0.0
    %153 = vmatpush1.msra.mxu0 0.0
    %154 = vmatprep.subr.mxu0 0.0
    %155 = vmatpush1.msra.mxu0 0.0
    %156 = vmatprep.subr.mxu0 0.0
    %157 = vmatpush1.msra.mxu0 0.0
    %158 = vmatprep.subr.mxu0 0.0
    %159 = vmatpush1.msra.mxu0 0.0
    %160 = vmatprep.subr.mxu0 0.0
    %161 = vmatpush1.msra.mxu0 0.0
    %162 = vmatprep.subr.mxu0 0.0
    %163 = vmatpush1.msra.mxu0 0.0
    %164 = vmatprep.subr.mxu0 0.0
    %165 = vmatpush1.msra.mxu0 0.0
    %166 = vmatprep.subr.mxu0 0.0
    %167 = vmatpush1.msra.mxu0 0.0
    %168 = vmatprep.subr.mxu0 0.0
    %169 = vmatpush1.msra.mxu0 0.0
    %170 = vmatprep.subr.mxu0 0.0
    %171 = vmatpush1.msra.mxu0 0.0
    %172 = vmatprep.subr.mxu0 0.0
    %173 = vmatpush1.msra.mxu0 0.0
    %174 = vmatprep.subr.mxu0 0.0
    %175 = vmatpush1.msra.mxu0 0.0
    %176 = vmatprep.subr.mxu0 0.0
    %177 = vmatpush1.msra.mxu0 0.0
    %178 = vmatprep.subr.mxu0 0.0
    %179 = vmatpush1.msra.mxu0 0.0
    %180 = vmatprep.mubr.f32.mxu0 0.0
    %181 = vmatmul.mubr.f32.gmra.mrb[0].mxu0 %v114
    %v182 = vpop.f32.mrb[0].mxu0
    %v183 = vadd.f32 %v111, %v182
    %v184 = vpop.f32.mrb[0].mxu0
    %185 = vdwg.mxu0
    %v186 = vmax.f32 %v183, 0.0
    %v187 = vld [vmem:[%s3] sm:$0xff]
    %v188 = vld [vmem:[%s3 + $0x8] sm:$0xff]
    %v189 = vld [vmem:[%s3 + $0x10] sm:$0xff]
    %v190 = vld [vmem:[%s3 + $0x18] sm:$0xff]
    %v191 = vld [vmem:[%s4 + $0x2] sm:$0x1]
    %v192 = vlaneseq
    %v193 = vshrl.u32 %v192, 7
    %v194 = vsub.s32 0, %v193
    %v195 = vrot.slane %v191, %v194
    %v197 = vsel %vm112, %v186, 0
    %199 = vmatprep.subr.mxu0 0.0
    %200 = vmatpush1.msra.mxu0 %v187
    %201 = vmatprep.subr.mxu0 0.0
    %202 = vmatpush1.msra.mxu0 %v188
    %203 = vmatprep.subr.mxu0 0.0
    %204 = vmatpush1.msra.mxu0 %v189
    %205 = vmatprep.subr.mxu0 0.0
    %206 = vmatpush1.msra.mxu0 %v190
    %207 = vmatprep.subr.mxu0 0.0
    %208 = vmatpush1.msra.mxu0 0.0
    %209 = vmatprep.subr.mxu0 0.0
    %210 = vmatpush1.msra.mxu0 0.0
    %211 = vmatprep.subr.mxu0 0.0
    %212 = vmatpush1.msra.mxu0 0.0
    %213 = vmatprep.subr.mxu0 0.0
    %214 = vmatpush1.msra.mxu0 0.0
    %215 = vmatprep.subr.mxu0 0.0
    %216 = vmatpush1.msra.mxu0 0.0
    %217 = vmatprep.subr.mxu0 0.0
    %218 = vmatpush1.msra.mxu0 0.0
    %219 = vmatprep.subr.mxu0 0.0
    %220 = vmatpush1.msra.mxu0 0.0
    %221 = vmatprep.subr.mxu0 0.0
    %222 = vmatpush1.msra.mxu0 0.0
    %223 = vmatprep.subr.mxu0 0.0
    %224 = vmatpush1.msra.mxu0 0.0
    %225 = vmatprep.subr.mxu0 0.0
    %226 = vmatpush1.msra.mxu0 0.0
    %227 = vmatprep.subr.mxu0 0.0
    %228 = vmatpush1.msra.mxu0 0.0
    %229 = vmatprep.subr.mxu0 0.0
    %230 = vmatpush1.msra.mxu0 0.0
    %231 = vmatprep.subr.mxu0 0.0
    %232 = vmatpush1.msra.mxu0 0.0
    %233 = vmatprep.subr.mxu0 0.0
    %234 = vmatpush1.msra.mxu0 0.0
    %235 = vmatprep.subr.mxu0 0.0
    %236 = vmatpush1.msra.mxu0 0.0
    %237 = vmatprep.subr.mxu0 0.0
    %238 = vmatpush1.msra.mxu0 0.0
    %239 = vmatprep.subr.mxu0 0.0
    %240 = vmatpush1.msra.mxu0 0.0
    %241 = vmatprep.subr.mxu0 0.0
    %242 = vmatpush1.msra.mxu0 0.0
    %243 = vmatprep.subr.mxu0 0.0
    %244 = vmatpush1.msra.mxu0 0.0
    %245 = vmatprep.subr.mxu0 0.0
    %246 = vmatpush1.msra.mxu0 0.0
    %247 = vmatprep.subr.mxu0 0.0
    %248 = vmatpush1.msra.mxu0 0.0
    %249 = vmatprep.subr.mxu0 0.0
    %250 = vmatpush1.msra.mxu0 0.0
    %251 = vmatprep.subr.mxu0 0.0
    %252 = vmatpush1.msra.mxu0 0.0
    %253 = vmatprep.subr.mxu0 0.0
    %254 = vmatpush1.msra.mxu0 0.0
    %255 = vmatprep.subr.mxu0 0.0
    %256 = vmatpush1.msra.mxu0 0.0
    %257 = vmatprep.subr.mxu0 0.0
    %258 = vmatpush1.msra.mxu0 0.0
    %259 = vmatprep.subr.mxu0 0.0
    %260 = vmatpush1.msra.mxu0 0.0
    %261 = vmatprep.subr.mxu0 0.0
    %262 = vmatpush1.msra.mxu0 0.0
    %263 = vmatprep.mubr.f32.mxu0 0.0
    %264 = vmatmul.mubr.f32.gmra.mrb[0].mxu0 %v197
    %v265 = vpop.f32.mrb[0].mxu0
    %v266 = vadd.f32 %v195, %v265
    %v267 = vpop.f32.mrb[0].mxu0
    %268 = vdwg.mxu0
    %v269 = vtanh.pop %v266
    %vm270 = vcmask 25600
    %271 = vst.msk [vmem:[#allocation2] sm:$0x3] %vm270, %v269
    // Predicated region
    $region22: #{tpu_custom_call.1} parent=1 // pred_check
      _
    $region23: #{tpu_custom_call.1} parent=1 // pred_check_branch
      %273 = sbr.rel (0) target = $region25
    $region24: #{tpu_custom_call.1} parent=1 // pred_region
      %s275 = ssub.s32 32, 32
      %276 = vsyncadd [#allocation3], %s275
      %s278 = sshll.u32 [#allocation2], 4
      %s279 = int_to_ptr.vmem [resolvable:$true] %s278
      %281 = dma.vmem_to_hbm [thread:$0]  %s279, 32, %s5, [#allocation3]
    $region25: #{tpu_custom_call.1} parent=1 // pred_fallthru
      _
    // Predicated region
    $region26: #{tpu_custom_call.1} parent=1 // pred_check
      _
    $region27: #{tpu_custom_call.1} parent=1 // pred_check_branch
      %283 = sbr.rel (0) target = $region29
    $region28: #{tpu_custom_call.1} parent=1 // pred_region
      %284 = dma.done [#allocation3], 32
    $region29: #{tpu_custom_call.1} parent=1 // pred_fallthru
      _
    %285 = vsyncpa [#allocation3], 1

</llo_original>
